<compile_context>
chip_gen: v5e
topology: v5e:2x2
jax: 0.10.0
libtpu: 0.0.40
codegen_flags: <defaults>
</compile_context>

<pallas_src>
import functools

import jax
import jax.numpy as jnp
from jax.experimental import pallas as pl
from jax.experimental.pallas import tpu as pltpu

_LANES = 128


def _mirror_mse_kernel(pred_ref, targ_ref, sq_ref, corr_ref, *, n_valid, steps):
    c = pl.program_id(0)  # "parallel" split (megacore on v7x)
    i = pl.program_id(1)  # "arbitrary" reduction step within the split

    @pl.when(i == 0)
    def _init():
        sq_ref[...] = jnp.zeros_like(sq_ref)
        corr_ref[...] = jnp.zeros_like(corr_ref)

    p = pred_ref[...].astype(jnp.float32)
    t = targ_ref[...].astype(jnp.float32)
    rows, lanes = p.shape

    d = p - t
    sq = d * d  # regular squared error (zero padding contributes 0 here)

    # Mirror correction only applies to x coordinates (flat index % 3 == 0)
    # of *valid* (non-padding) elements.
    row = jax.lax.broadcasted_iota(jnp.int32, p.shape, 0)
    lane = jax.lax.broadcasted_iota(jnp.int32, p.shape, 1)
    base_row = (c * steps + i) * rows
    flat_idx = (base_row + row) * lanes + lane
    is_x = jnp.logical_and(flat_idx % 3 == 0, flat_idx < n_valid)
    corr = jnp.where(is_x, (2.0 * p - 1.0) * (2.0 * t - 1.0), 0.0)

    # Reduce the (rows, 128) block to a single (8, 128) vreg partial using
    # cross-vreg adds only (no cross-sublane/lane XLU work in the hot loop).
    sq_part = jnp.sum(sq.reshape(rows // 8, 8, lanes), axis=0)
    corr_part = jnp.sum(corr.reshape(rows // 8, 8, lanes), axis=0)

    # Outputs are the resident accumulators (same output block for all i).
    sq_ref[...] += sq_part[None]
    corr_ref[...] += corr_part[None]


def mirror_mse_loss(prediction, target, *, block_rows=2048, num_splits=2):
    """Pallas TPU implementation of MirrorMSELoss.forward.

    prediction, target: (..., 3) arrays of identical shape. Returns a scalar.
    """
    assert prediction.shape == target.shape
    assert prediction.shape[-1] == 3

    n_valid = int(prediction.size)  # static

    # Lane-dense flat view: pad to num_splits * steps * block_rows rows of 128.
    rows_needed = -(-n_valid // _LANES)
    per_split_rows = -(-rows_needed // num_splits)
    block_rows = max(8, min(block_rows, ((per_split_rows + 7) // 8) * 8))
    steps = max(1, -(-per_split_rows // block_rows))
    total_rows = num_splits * steps * block_rows
    padded = total_rows * _LANES

    def _flat(x):
        x = jnp.ravel(x)
        x = jnp.pad(x, (0, padded - n_valid))
        return x.reshape(total_rows, _LANES)

    p2 = _flat(prediction)
    t2 = _flat(target)

    kernel = functools.partial(_mirror_mse_kernel, n_valid=n_valid, steps=steps)

    sq_sums, corr_sums = pl.pallas_call(
        kernel,
        out_shape=(
            jax.ShapeDtypeStruct((num_splits, 8, _LANES), jnp.float32),
            jax.ShapeDtypeStruct((num_splits, 8, _LANES), jnp.float32),
        ),
        grid_spec=pltpu.PrefetchScalarGridSpec(
            num_scalar_prefetch=0,
            grid=(num_splits, steps),
            in_specs=[
                pl.BlockSpec((block_rows, _LANES), lambda c, i: (c * steps + i, 0)),
                pl.BlockSpec((block_rows, _LANES), lambda c, i: (c * steps + i, 0)),
            ],
            out_specs=(
                pl.BlockSpec((1, 8, _LANES), lambda c, i: (c, 0, 0)),
                pl.BlockSpec((1, 8, _LANES), lambda c, i: (c, 0, 0)),
            ),
        ),
        compiler_params=pltpu.CompilerParams(
            dimension_semantics=("parallel", "arbitrary"),
        ),
    )(p2, t2)

    reg_sse = jnp.sum(sq_sums)
    mirror_sse = reg_sse + jnp.sum(corr_sums)
    numel = jnp.float32(n_valid)
    reg_loss = reg_sse / numel
    mirror_loss = mirror_sse / numel
    return jnp.minimum(reg_loss, mirror_loss).astype(prediction.dtype)


def _reference(prediction, target):
    add_vec = jnp.array([0.5, 0.0, 0.0], dtype=target.dtype)
    mult_vec = jnp.array([-1.0, 1.0, 1.0], dtype=target.dtype)
    target_mirror = (target - add_vec) * mult_vec + add_vec
    reg = jnp.mean((prediction - target) ** 2)
    mir = jnp.mean((prediction - target_mirror) ** 2)
    return jnp.minimum(reg, mir)


if __name__ == "__main__":
    key = jax.random.PRNGKey(0)
    k1, k2 = jax.random.split(key)
    # Small (N, 3) point clouds; N deliberately not a multiple of anything to
    # exercise the padding/masking path.
    n_points = 173
    prediction = jax.random.uniform(k1, (n_points, 3), dtype=jnp.float32)
    target = jax.random.uniform(k2, (n_points, 3), dtype=jnp.float32)

    loss = jax.block_until_ready(mirror_mse_loss(prediction, target))
    ref = jax.block_until_ready(_reference(prediction, target))

    assert jnp.allclose(loss, ref, rtol=1e-5, atol=1e-6), (loss, ref)
    print("KERNEL_OK")
</pallas_src>

<mosaic_0001>
module attributes {stable_mosaic.version = 11 : i64} {
  func.func @_mirror_mse_kernel(%arg0: i32, %arg1: i32, %arg2: memref<8x128xf32, #tpu.memory_space<vmem>>, %arg3: memref<8x128xf32, #tpu.memory_space<vmem>>, %arg4: memref<1x8x128xf32, #tpu.memory_space<vmem>>, %arg5: memref<1x8x128xf32, #tpu.memory_space<vmem>>) attributes {dimension_semantics = [#tpu.dimension_semantics<parallel>, #tpu.dimension_semantics<arbitrary>], iteration_bounds = array<i64: 2, 1>, scalar_prefetch = 0 : i64, scratch_operands = 0 : i64, tpu.core_type = #tpu.core_type<tc>, window_params = [{transform_indices = @transform_0, window_bounds = array<i64: 8, 128>}, {transform_indices = @transform_1, window_bounds = array<i64: 8, 128>}, {transform_indices = @transform_2, window_bounds = array<i64: 1, 8, 128>}, {transform_indices = @transform_3, window_bounds = array<i64: 1, 8, 128>}]} {
    %c0_i32 = arith.constant 0 : i32
    %0 = arith.cmpi eq, %arg1, %c0_i32 : i32
    %1 = arith.extui %0 : i1 to i32
    %c0_i32_0 = arith.constant 0 : i32
    %2 = arith.cmpi ne, %1, %c0_i32_0 : i32
    scf.if %2 {
      %cst_28 = arith.constant 0.000000e+00 : f32
      %61 = vector.broadcast %cst_28 : f32 to vector<1x8x128xf32>
      %c0_29 = arith.constant 0 : index
      %c0_30 = arith.constant 0 : index
      %c0_31 = arith.constant 0 : index
      %62 = vector.load %arg4[%c0_29, %c0_30, %c0_31] : memref<1x8x128xf32, #tpu.memory_space<vmem>>, vector<1x8x128xf32>
      tpu.vector_store %arg4[%c0_29, %c0_30, %c0_31], %61 {strides = array<i32>} : memref<1x8x128xf32, #tpu.memory_space<vmem>>, vector<1x8x128xf32>,
      %cst_32 = arith.constant 0.000000e+00 : f32
      %63 = vector.broadcast %cst_32 : f32 to vector<1x8x128xf32>
      %c0_33 = arith.constant 0 : index
      %c0_34 = arith.constant 0 : index
      %c0_35 = arith.constant 0 : index
      %64 = vector.load %arg5[%c0_33, %c0_34, %c0_35] : memref<1x8x128xf32, #tpu.memory_space<vmem>>, vector<1x8x128xf32>
      tpu.vector_store %arg5[%c0_33, %c0_34, %c0_35], %63 {strides = array<i32>} : memref<1x8x128xf32, #tpu.memory_space<vmem>>, vector<1x8x128xf32>,
    } else {
    }
    %c0 = arith.constant 0 : index
    %c0_1 = arith.constant 0 : index
    %3 = vector.load %arg2[%c0, %c0_1] : memref<8x128xf32, #tpu.memory_space<vmem>>, vector<8x128xf32>
    %c0_2 = arith.constant 0 : index
    %c0_3 = arith.constant 0 : index
    %4 = vector.load %arg3[%c0_2, %c0_3] : memref<8x128xf32, #tpu.memory_space<vmem>>, vector<8x128xf32>
    %5 = arith.subf %3, %4 : vector<8x128xf32>
    %6 = arith.mulf %5, %5 : vector<8x128xf32>
    %7 = tpu.iota {dimensions = array<i32: 0>} : vector<8x128xi32>
    %8 = tpu.iota {dimensions = array<i32: 1>} : vector<8x128xi32>
    %c1_i32 = arith.constant 1 : i32
    %9 = arith.muli %arg0, %c1_i32 : i32
    %10 = arith.addi %9, %arg1 : i32
    %c8_i32 = arith.constant 8 : i32
    %11 = arith.muli %10, %c8_i32 : i32
    %12 = vector.broadcast %11 : i32 to vector<8x128xi32>
    %13 = arith.addi %12, %7 : vector<8x128xi32>
    %c128_i32 = arith.constant 128 : i32
    %14 = vector.broadcast %c128_i32 : i32 to vector<8x128xi32>
    %15 = arith.muli %13, %14 : vector<8x128xi32>
    %16 = arith.addi %15, %8 : vector<8x128xi32>
    %c3_i32 = arith.constant 3 : i32
    %c0_i32_4 = arith.constant 0 : i32
    %17 = arith.cmpi eq, %c3_i32, %c0_i32_4 : i32
    %c1_i32_5 = arith.constant 1 : i32
    %18 = arith.select %17, %c1_i32_5, %c3_i32 : i32
    %19 = vector.broadcast %18 : i32 to vector<8x128xi32>
    %20 = arith.remsi %16, %19 : vector<8x128xi32>
    %c0_i32_6 = arith.constant 0 : i32
    %21 = vector.broadcast %c0_i32_6 : i32 to vector<8x128xi32>
    %22 = arith.cmpi ne, %20, %21 : vector<8x128xi32>
    %c0_i32_7 = arith.constant 0 : i32
    %23 = vector.broadcast %c0_i32_7 : i32 to vector<8x128xi32>
    %24 = arith.cmpi slt, %20, %23 : vector<8x128xi32>
    %c0_i32_8 = arith.constant 0 : i32
    %25 = arith.cmpi slt, %18, %c0_i32_8 : i32
    %26 = vector.broadcast %25 : i1 to vector<8x128xi1>
    %27 = vector.broadcast %26 : vector<8x128xi1> to vector<8x128xi1>
    %28 = arith.xori %24, %27 : vector<8x128xi1>
    %29 = arith.andi %28, %22 : vector<8x128xi1>
    %30 = vector.broadcast %18 : i32 to vector<8x128xi32>
    %31 = arith.addi %20, %30 : vector<8x128xi32>
    %32 = arith.select %29, %31, %20 : vector<8x128xi1>, vector<8x128xi32>
    %c0_i32_9 = arith.constant 0 : i32
    %33 = vector.broadcast %c0_i32_9 : i32 to vector<8x128xi32>
    %34 = arith.cmpi eq, %32, %33 : vector<8x128xi32>
    %c519_i32 = arith.constant 519 : i32
    %35 = vector.broadcast %c519_i32 : i32 to vector<8x128xi32>
    %36 = arith.cmpi slt, %16, %35 : vector<8x128xi32>
    %37 = arith.andi %34, %36 : vector<8x128xi1>
    %cst = arith.constant 2.000000e+00 : f32
    %38 = vector.broadcast %cst : f32 to vector<8x128xf32>
    %39 = arith.mulf %38, %3 : vector<8x128xf32>
    %cst_10 = arith.constant 1.000000e+00 : f32
    %40 = vector.broadcast %cst_10 : f32 to vector<8x128xf32>
    %41 = arith.subf %39, %40 : vector<8x128xf32>
    %cst_11 = arith.constant 2.000000e+00 : f32
    %42 = vector.broadcast %cst_11 : f32 to vector<8x128xf32>
    %43 = arith.mulf %42, %4 : vector<8x128xf32>
    %cst_12 = arith.constant 1.000000e+00 : f32
    %44 = vector.broadcast %cst_12 : f32 to vector<8x128xf32>
    %45 = arith.subf %43, %44 : vector<8x128xf32>
    %46 = arith.mulf %41, %45 : vector<8x128xf32>
    %cst_13 = arith.constant 0.000000e+00 : f32
    %47 = vector.broadcast %cst_13 : f32 to vector<8x128xf32>
    %48 = arith.select %37, %46, %47 : vector<8x128xi1>, vector<8x128xf32>
    %49 = vector.shape_cast %6 : vector<8x128xf32> to vector<1x8x128xf32>
    %cst_14 = arith.constant dense<0.000000e+00> : vector<8x128xf32>
    %50 = vector.multi_reduction <add>, %49, %cst_14 [0] : vector<1x8x128xf32> to vector<8x128xf32>
    %51 = vector.shape_cast %48 : vector<8x128xf32> to vector<1x8x128xf32>
    %cst_15 = arith.constant dense<0.000000e+00> : vector<8x128xf32>
    %52 = vector.multi_reduction <add>, %51, %cst_15 [0] : vector<1x8x128xf32> to vector<8x128xf32>
    %c0_16 = arith.constant 0 : index
    %c0_17 = arith.constant 0 : index
    %c0_18 = arith.constant 0 : index
    %53 = vector.load %arg4[%c0_16, %c0_17, %c0_18] : memref<1x8x128xf32, #tpu.memory_space<vmem>>, vector<1x8x128xf32>
    %54 = vector.shape_cast %50 : vector<8x128xf32> to vector<1x8x128xf32>
    %55 = arith.addf %53, %54 : vector<1x8x128xf32>
    %c0_19 = arith.constant 0 : index
    %c0_20 = arith.constant 0 : index
    %c0_21 = arith.constant 0 : index
    %56 = vector.load %arg4[%c0_19, %c0_20, %c0_21] : memref<1x8x128xf32, #tpu.memory_space<vmem>>, vector<1x8x128xf32>
    tpu.vector_store %arg4[%c0_19, %c0_20, %c0_21], %55 {strides = array<i32>} : memref<1x8x128xf32, #tpu.memory_space<vmem>>, vector<1x8x128xf32>,
    %c0_22 = arith.constant 0 : index
    %c0_23 = arith.constant 0 : index
    %c0_24 = arith.constant 0 : index
    %57 = vector.load %arg5[%c0_22, %c0_23, %c0_24] : memref<1x8x128xf32, #tpu.memory_space<vmem>>, vector<1x8x128xf32>
    %58 = vector.shape_cast %52 : vector<8x128xf32> to vector<1x8x128xf32>
    %59 = arith.addf %57, %58 : vector<1x8x128xf32>
    %c0_25 = arith.constant 0 : index
    %c0_26 = arith.constant 0 : index
    %c0_27 = arith.constant 0 : index
    %60 = vector.load %arg5[%c0_25, %c0_26, %c0_27] : memref<1x8x128xf32, #tpu.memory_space<vmem>>, vector<1x8x128xf32>
    tpu.vector_store %arg5[%c0_25, %c0_26, %c0_27], %59 {strides = array<i32>} : memref<1x8x128xf32, #tpu.memory_space<vmem>>, vector<1x8x128xf32>,
    return
  }
  func.func @transform_0(%arg0: i32, %arg1: i32) -> (i32, i32) {
    %c1_i32 = arith.constant 1 : i32
    %0 = arith.muli %arg0, %c1_i32 : i32
    %1 = arith.addi %0, %arg1 : i32
    %c0_i32 = arith.constant 0 : i32
    %c0_i32_0 = arith.constant 0 : i32
    return %1, %c0_i32 : i32, i32
  }
  func.func @transform_1(%arg0: i32, %arg1: i32) -> (i32, i32) {
    %c1_i32 = arith.constant 1 : i32
    %0 = arith.muli %arg0, %c1_i32 : i32
    %1 = arith.addi %0, %arg1 : i32
    %c0_i32 = arith.constant 0 : i32
    %c0_i32_0 = arith.constant 0 : i32
    return %1, %c0_i32 : i32, i32
  }
  func.func @transform_2(%arg0: i32, %arg1: i32) -> (i32, i32, i32) {
    %c0_i32 = arith.constant 0 : i32
    %c0_i32_0 = arith.constant 0 : i32
    %c0_i32_1 = arith.constant 0 : i32
    return %arg0, %c0_i32, %c0_i32_0 : i32, i32, i32
  }
  func.func @transform_3(%arg0: i32, %arg1: i32) -> (i32, i32, i32) {
    %c0_i32 = arith.constant 0 : i32
    %c0_i32_0 = arith.constant 0 : i32
    %c0_i32_1 = arith.constant 0 : i32
    return %arg0, %c0_i32, %c0_i32_0 : i32, i32, i32
  }
}

</mosaic_0001>

<llo_original>
// kernel: tpu_custom_call.1
$region0: #{tpu_custom_call.1}
  #allocation0 [shape = 'u32[]', space=smem, size = 0x4, offset = 0x4, fixed_abs, tag = 'smem constant byte address 0x4 - core index']
  #allocation1 [shape = 'u32[72,128]{1,0:T(1,128)}', space=vmem, size = 0x9000, scoped, tag = 'internal scratch']
  %s0 = inlined_call_operand.hbm [shape: f32[16,128], index: 0, kind: input, shape index: {}]
  %s1 = inlined_call_operand.hbm [shape: f32[16,128], index: 1, kind: input, shape index: {}]
  %s2 = inlined_call_operand.hbm [shape: f32[2,8,128], index: 2, kind: output, shape index: {0}]
  %s3 = inlined_call_operand.hbm [shape: f32[2,8,128], index: 3, kind: output, shape index: {1}]
  %4 = xla_tuple %s2, %s3
  %s5 = sld [smem:[#allocation0]]
  $region61: #{tpu_custom_call.1} parent=0
    _
  %s7 = ssub.s32 1, %s5
  %s8 = scalar_select 0, %s7, %s5
  $region1: #{tpu_custom_call.1} parent=0
    #allocation2 [shape = 'u8[8192]{0}', space=vmem, size = 0x2000, scoped, tag = 'input window, operand 0']
    #allocation3 [shape = 's32[2]{0}', space=sflag, size = 0x8, scoped, tag = 'scoped memory for tpu_custom_call.1']
    #allocation4 [shape = 's32[2]{0}', space=sflag, size = 0x8, scoped, tag = 'scoped memory for tpu_custom_call.1']
    #allocation5 [shape = 'u8[8192]{0}', space=vmem, size = 0x2000, scoped, tag = 'input window, operand 1']
    #allocation6 [shape = 's32[2]{0}', space=sflag, size = 0x8, scoped, tag = 'scoped memory for tpu_custom_call.1']
    #allocation7 [shape = 'u8[8192]{0}', space=vmem, size = 0x2000, scoped, tag = 'output window, operand 0']
    #allocation8 [shape = 'u8[8192]{0}', space=vmem, size = 0x2000, scoped, tag = 'output window, operand 1']
    #allocation9 [shape = 's32[2]{0}', space=sflag, size = 0x8, scoped, tag = 'scoped memory for tpu_custom_call.1']
    %9 = vsyncpa [#allocation3], 0
    %s10 = scalar_lea.sflag [#allocation3], 1
    %11 = vsyncpa %s10, 0
    %12 = vsyncpa [#allocation6], 0
    %s13 = scalar_lea.sflag [#allocation6], 1
    %14 = vsyncpa %s13, 0
    %15 = vsyncpa [#allocation4], 0
    %s16 = scalar_lea.sflag [#allocation4], 1
    %17 = vsyncpa %s16, 0
    %18 = vsyncpa [#allocation9], 0
    %s19 = scalar_lea.sflag [#allocation9], 1
    %20 = vsyncpa %s19, 0
    loop: start=0, step=1, limit=4
    $region2: #{tpu_custom_call.1} parent=1 // loop_pre_header
      _
    $region3: #{tpu_custom_call.1} parent=1 // loop_header
      %s22 = sphi 0, %s26
      %p23 = scmp.ge.s32.totalorder %s22, 4
      %s29 = sphi 0, %s41
      %s30 = sphi 0, %s37
      %s31 = sphi 0, %s29
      %s32 = sphi 0, %s30
      %s33 = sphi 0, %s31
      %s34 = sphi 0, %s32
      %s46 = sphi 0, %s48
      %s49 = sphi 0, %s46
      %s50 = sphi 0, %s49
      %s66 = sphi 0, %s50
      %s74 = sphi 0, %s76
      %s77 = sphi 0, %s74
      %s78 = sphi 0, %s77
      %s94 = sphi 0, %s78
      %s100 = sphi 0, %s102
      %s103 = sphi 0, %s100
      %s104 = sphi 0, %s103
      %s120 = sphi 0, %s104
      %s126 = sphi 0, %s128
      %s129 = sphi 0, %s126
      %s130 = sphi 0, %s129
      %s146 = sphi 0, %s130
    $region4: #{tpu_custom_call.1} parent=1 // loop_header_branch
      %25 = sbr.rel (%p23) target = $region8
    $region5: #{tpu_custom_call.1} parent=1 // loop_body
      %s27 = ssub.s32 %s22, 1
      %s28 = ssub.s32 %s22, 2
      %s35 = sadd.s32 1, %s30
      %p36 = scmp.ge.s32.totalorder %s35, 1
      %s37 = scalar_select %p36, 0, %s35
      %s38 = sadd.s32 1, %s29
      %s39 = scalar_select %p36, %s38, %s29
      %p40 = scmp.ge.s32.totalorder %s39, 2
      %s41 = scalar_select %p40, 0, %s39
      %s42 = sadd.s32 %s29, %s30
      %s43 = sadd.s32 %s41, %s37
      %s44 = ssub.s32 %s42, %s43
      %p45 = scmp.eq.s32.totalorder %s44, 0
      %s47 = sadd.s32 %s46, 1
      %s48 = scalar_select %p45, %s46, %s47
      %p51 = pneg %p45
      %p52 = scmp.eq.s32.totalorder %s22, 1
      %p53 = por %p51, %p52
      %p54 = scmp.ne.s32.totalorder %s46, %s49
      %p55 = scmp.eq.s32.totalorder %s22, 0
      %p56 = por %p54, %p55
      %p57 = scmp.ne.s32.totalorder %s46, %s49
      %p58 = scmp.eq.s32.totalorder %s27, 1
      %p59 = por %p57, %p58
      %p60 = scmp.ne.s32.totalorder %s49, %s50
      %p61 = scmp.eq.s32.totalorder %s27, 0
      %p62 = por %p60, %p61
      %p63 = scmp.ne.s32.totalorder %s49, %s50
      %p64 = scmp.eq.s32.totalorder %s28, 1
      %p65 = por %p63, %p64
      %p67 = scmp.ne.s32.totalorder %s50, %s66
      %p68 = scmp.eq.s32.totalorder %s28, 0
      %p69 = por %p67, %p68
      %s70 = sadd.s32 %s29, %s30
      %s71 = sadd.s32 %s41, %s37
      %s72 = ssub.s32 %s70, %s71
      %p73 = scmp.eq.s32.totalorder %s72, 0
      %s75 = sadd.s32 %s74, 1
      %s76 = scalar_select %p73, %s74, %s75
      %p79 = pneg %p73
      %p80 = scmp.eq.s32.totalorder %s22, 1
      %p81 = por %p79, %p80
      %p82 = scmp.ne.s32.totalorder %s74, %s77
      %p83 = scmp.eq.s32.totalorder %s22, 0
      %p84 = por %p82, %p83
      %p85 = scmp.ne.s32.totalorder %s74, %s77
      %p86 = scmp.eq.s32.totalorder %s27, 1
      %p87 = por %p85, %p86
      %p88 = scmp.ne.s32.totalorder %s77, %s78
      %p89 = scmp.eq.s32.totalorder %s27, 0
      %p90 = por %p88, %p89
      %p91 = scmp.ne.s32.totalorder %s77, %s78
      %p92 = scmp.eq.s32.totalorder %s28, 1
      %p93 = por %p91, %p92
      %p95 = scmp.ne.s32.totalorder %s78, %s94
      %p96 = scmp.eq.s32.totalorder %s28, 0
      %p97 = por %p95, %p96
      %s98 = ssub.s32 %s29, %s41
      %p99 = scmp.eq.s32.totalorder %s98, 0
      %s101 = sadd.s32 %s100, 1
      %s102 = scalar_select %p99, %s100, %s101
      %p105 = pneg %p99
      %p106 = scmp.eq.s32.totalorder %s22, 1
      %p107 = por %p105, %p106
      %p108 = scmp.ne.s32.totalorder %s100, %s103
      %p109 = scmp.eq.s32.totalorder %s22, 0
      %p110 = por %p108, %p109
      %p111 = scmp.ne.s32.totalorder %s100, %s103
      %p112 = scmp.eq.s32.totalorder %s27, 1
      %p113 = por %p111, %p112
      %p114 = scmp.ne.s32.totalorder %s103, %s104
      %p115 = scmp.eq.s32.totalorder %s27, 0
      %p116 = por %p114, %p115
      %p117 = scmp.ne.s32.totalorder %s103, %s104
      %p118 = scmp.eq.s32.totalorder %s28, 1
      %p119 = por %p117, %p118
      %p121 = scmp.ne.s32.totalorder %s104, %s120
      %p122 = scmp.eq.s32.totalorder %s28, 0
      %p123 = por %p121, %p122
      %s124 = ssub.s32 %s29, %s41
      %p125 = scmp.eq.s32.totalorder %s124, 0
      %s127 = sadd.s32 %s126, 1
      %s128 = scalar_select %p125, %s126, %s127
      %p131 = pneg %p125
      %p132 = scmp.eq.s32.totalorder %s22, 1
      %p133 = por %p131, %p132
      %p134 = scmp.ne.s32.totalorder %s126, %s129
      %p135 = scmp.eq.s32.totalorder %s22, 0
      %p136 = por %p134, %p135
      %p137 = scmp.ne.s32.totalorder %s126, %s129
      %p138 = scmp.eq.s32.totalorder %s27, 1
      %p139 = por %p137, %p138
      %p140 = scmp.ne.s32.totalorder %s129, %s130
      %p141 = scmp.eq.s32.totalorder %s27, 0
      %p142 = por %p140, %p141
      %p143 = scmp.ne.s32.totalorder %s129, %s130
      %p144 = scmp.eq.s32.totalorder %s28, 1
      %p145 = por %p143, %p144
      %p147 = scmp.ne.s32.totalorder %s130, %s146
      %p148 = scmp.eq.s32.totalorder %s28, 0
      %p149 = por %p147, %p148
      %p150 = scmp.le.s32.totalorder 1, %s22
      %p151 = scmp.lt.s32.totalorder %s22, 3
      %p152 = pnand %p150, %p151
      %p153 = pneg %p152
      // Predicated region
      $region9: #{tpu_custom_call.1} parent=5 // pred_check
        _
      $region10: #{tpu_custom_call.1} parent=5 // pred_check_branch
        %155 = sbr.rel (%p152) target = $region12
      $region11: #{tpu_custom_call.1} parent=5 // pred_region
        %s156 = ssub.s32 %s22, 1
      $region12: #{tpu_custom_call.1} parent=5 // pred_fallthru
        _
      %p157 = scmp.lt.s32.totalorder %s22, 2
      // Predicated region
      $region13: #{tpu_custom_call.1} parent=5 // pred_check
        %p158 = pneg %p157
      $region14: #{tpu_custom_call.1} parent=5 // pred_check_branch
        %160 = sbr.rel (%p158) target = $region16
      $region15: #{tpu_custom_call.1} parent=5 // pred_region
        // Predicated region
        $region17: #{tpu_custom_call.1} parent=15 // pred_check
          %p161 = pneg %p56
        $region18: #{tpu_custom_call.1} parent=15 // pred_check_branch
          %163 = sbr.rel (%p161) target = $region20
        $region19: #{tpu_custom_call.1} parent=15 // pred_region
          %s164 = sand.u32 %s46, 1
          %s165 = scalar_lea.sflag [#allocation3], %s164
          %s166 = sand.u32 %s46, 1
          %s167 = smul.addr %s166, 8
          %s168 = scalar_lea.vmem [#allocation2], %s167
          %s169 = sadd.s32 %s29, %s30
          %171 = vsyncadd %s165, 0
          %s172 = smul.addr %s169, 8
          %s173 = scalar_lea.hbm %s0, %s172
          %s175 = sshll.u32 %s173, 4
          %s176 = int_to_ptr.hbm [resolvable:$true] %s175
          %s177 = sshll.u32 %s168, 4
          %s178 = int_to_ptr.vmem [resolvable:$true] %s177
          %180 = dma.hbm_to_vmem [thread:$0]  %s176, 128, %s178, %s165
        $region20: #{tpu_custom_call.1} parent=15 // pred_fallthru
          _
        // Predicated region
        $region21: #{tpu_custom_call.1} parent=15 // pred_check
          %p181 = pneg %p84
        $region22: #{tpu_custom_call.1} parent=15 // pred_check_branch
          %183 = sbr.rel (%p181) target = $region24
        $region23: #{tpu_custom_call.1} parent=15 // pred_region
          %s184 = sand.u32 %s74, 1
          %s185 = scalar_lea.sflag [#allocation6], %s184
          %s186 = sand.u32 %s74, 1
          %s187 = smul.addr %s186, 8
          %s188 = scalar_lea.vmem [#allocation5], %s187
          %s189 = sadd.s32 %s29, %s30
          %191 = vsyncadd %s185, 0
          %s192 = smul.addr %s189, 8
          %s193 = scalar_lea.hbm %s1, %s192
          %s195 = sshll.u32 %s193, 4
          %s196 = int_to_ptr.hbm [resolvable:$true] %s195
          %s197 = sshll.u32 %s188, 4
          %s198 = int_to_ptr.vmem [resolvable:$true] %s197
          %200 = dma.hbm_to_vmem [thread:$0]  %s196, 128, %s198, %s185
        $region24: #{tpu_custom_call.1} parent=15 // pred_fallthru
          _
      $region16: #{tpu_custom_call.1} parent=5 // pred_fallthru
        _
      %p201 = scmp.le.s32.totalorder 1, %s22
      %p202 = scmp.lt.s32.totalorder %s22, 3
      %p203 = pnand %p201, %p202
      %p204 = pneg %p203
      // Predicated region
      $region25: #{tpu_custom_call.1} parent=5 // pred_check
        _
      $region26: #{tpu_custom_call.1} parent=5 // pred_check_branch
        %206 = sbr.rel (%p203) target = $region28
      $region27: #{tpu_custom_call.1} parent=5 // pred_region
        %s207 = ssub.s32 %s22, 1
        %s208 = sand.u32 %s49, 1
        %s209 = scalar_lea.sflag [#allocation3], %s208
        %s210 = sand.u32 %s49, 1
        %s211 = smul.addr %s210, 8
        %s212 = scalar_lea.vmem [#allocation2], %s211
        // Predicated region
        $region29: #{tpu_custom_call.1} parent=27 // pred_check
          %p213 = pneg %p62
        $region30: #{tpu_custom_call.1} parent=27 // pred_check_branch
          %215 = sbr.rel (%p213) target = $region32
        $region31: #{tpu_custom_call.1} parent=27 // pred_region
          %217 = dma.done %s209, 128
        $region32: #{tpu_custom_call.1} parent=27 // pred_fallthru
          _
        %s218 = sand.u32 %s77, 1
        %s219 = scalar_lea.sflag [#allocation6], %s218
        %s220 = sand.u32 %s77, 1
        %s221 = smul.addr %s220, 8
        %s222 = scalar_lea.vmem [#allocation5], %s221
        // Predicated region
        $region33: #{tpu_custom_call.1} parent=27 // pred_check
          %p223 = pneg %p90
        $region34: #{tpu_custom_call.1} parent=27 // pred_check_branch
          %225 = sbr.rel (%p223) target = $region36
        $region35: #{tpu_custom_call.1} parent=27 // pred_region
          %227 = dma.done %s219, 128
        $region36: #{tpu_custom_call.1} parent=27 // pred_fallthru
          _
        %s228 = sand.u32 %s49, 1
        %s229 = scalar_lea.sflag [#allocation3], %s228
        %s230 = sand.u32 %s49, 1
        %s231 = smul.addr %s230, 8
        %s232 = scalar_lea.vmem [#allocation2], %s231
        %p233 = pneg %p62
        %p234 = pneg %p59
        %s235 = sand.u32 %s77, 1
        %s236 = scalar_lea.sflag [#allocation6], %s235
        %s237 = sand.u32 %s77, 1
        %s238 = smul.addr %s237, 8
        %s239 = scalar_lea.vmem [#allocation5], %s238
        %p240 = pneg %p90
        %p241 = pneg %p87
        %p242 = pneg %p116
        %p243 = pneg %p113
        %s244 = sand.u32 %s103, 1
        %s245 = scalar_lea.sflag [#allocation4], %s244
        %s246 = sand.u32 %s103, 1
        %s247 = smul.addr %s246, 8
        %s248 = scalar_lea.vmem [#allocation7], %s247
        %p249 = pneg %p142
        %p250 = pneg %p139
        %s251 = sand.u32 %s129, 1
        %s252 = scalar_lea.sflag [#allocation9], %s251
        %s253 = sand.u32 %s129, 1
        %s254 = smul.addr %s253, 8
        %s255 = scalar_lea.vmem [#allocation8], %s254
        %s256 = sadd.s32 %s31, %s32
        %s257 = sadd.s32 %s31, %s32
        %p258 = scmp.eq.s32.totalorder %s32, 0
        // Predicated region
        $region37: #{tpu_custom_call.1} parent=27 // pred_check
          %p259 = pneg %p258
        $region38: #{tpu_custom_call.1} parent=27 // pred_check_branch
          %261 = sbr.rel (%p259) target = $region40
        $region39: #{tpu_custom_call.1} parent=27 // pred_region
          %262 = vst [vmem:[%s248] sm:$0xff] 0.0
          %263 = vst [vmem:[%s255] sm:$0xff] 0.0
        $region40: #{tpu_custom_call.1} parent=27 // pred_fallthru
          _
        %v264 = vld [vmem:[%s212] sm:$0xff]
        %v265 = vld [vmem:[%s222] sm:$0xff]
        %v266 = vsub.f32 %v264, %v265
        %v267 = vmul.f32 %v266, %v266
        %v268 = vlaneseq
        %v269 = vshrl.u32 %v268, 7
        %v270 = vlaneseq
        %v271 = vand.u32 %v270, 127
        %s272 = sadd.s32 %s31, %s32
        %s273 = smul.u32 %s272, 8
        %v274 = vstv %s273
        %v275 = vadd.s32 %v274, %v269
        %v276 = vmul.u32 %v275, 128
        %v277 = vadd.s32 %v276, %v271
        %vm278 = vcmp.lt.s32.totalorder %v277, 0
        %v279 = vsub.s32 0, %v277
        %v280 = vsel %vm278, %v279, %v277
        %v281 = vand.u32 %v280, 65535
        %v282 = vshrl.u32 %v280, 16
        %v284 = vmul.u32 %v281, 43691
        %v285 = vmul.u32 %v281, 43690
        %v286 = vmul.u32 %v282, 43691
        %v287 = vmul.u32 %v282, 43690
        %v288 = vshll.u32 %v285, 16
        %v289 = vshrl.u32 %v285, 16
        %v290 = vshll.u32 %v286, 16
        %v291 = vshrl.u32 %v286, 16
        %vm292 = vc.u32 %v284, %v288
        %v293 = vsel %vm292, 1, 0
        %v294 = vadd.s32 %v284, %v288
        %v295 = vadd.s32 %v287, %v293
        %vm296 = vc.u32 %v294, %v290
        %v297 = vsel %vm296, 1, 0
        %v298 = vadd.s32 %v294, %v290
        %v299 = vadd.s32 %v295, %v297
        %v300 = vadd.s32 %v299, %v289
        %v301 = vadd.s32 %v300, %v291
        %v302 = vshrl.u32 %v301, 1
        %v303 = vmul.u32 %v302, 3
        %v304 = vsub.s32 %v280, %v303
        %v305 = vsub.s32 0, %v304
        %v306 = vsel %vm278, %v305, %v304
        %vm307 = vcmp.ne.s32.totalorder %v306, 0
        %vm308 = vcmp.lt.s32.totalorder %v306, 0
        %vm309 = vmand %vm308, %vm307
        %v310 = vadd.s32 %v306, 3
        %v311 = vsel %vm309, %v310, %v306
        %vm312 = vcmp.eq.s32.totalorder %v311, 0
        %vm313 = vcmp.lt.s32.totalorder %v277, 519
        %vm314 = vmand %vm312, %vm313
        %v315 = vmul.f32 %v264, 2.0
        %v316 = vsub.f32 %v315, 1.0
        %v317 = vmul.f32 %v265, 2.0
        %v318 = vsub.f32 %v317, 1.0
        %v319 = vmul.f32 %v316, %v318
        %v320 = vsel %vm314, %v319, 0.0
        %v321 = vadd.f32 %v267, 0.0
        %v322 = vadd.f32 %v320, 0.0
        %v323 = vld [vmem:[%s248] sm:$0xff]
        %v324 = vadd.f32 %v323, %v321
        %325 = vst [vmem:[%s248] sm:$0xff] %v324
        %v326 = vld [vmem:[%s255] sm:$0xff]
        %v327 = vadd.f32 %v326, %v322
        %328 = vst [vmem:[%s255] sm:$0xff] %v327
        %s329 = sand.u32 %s103, 1
        %s330 = scalar_lea.sflag [#allocation4], %s329
        %s331 = sand.u32 %s103, 1
        %s332 = smul.addr %s331, 8
        %s333 = scalar_lea.vmem [#allocation7], %s332
        %s334 = sand.u32 %s129, 1
        %s335 = scalar_lea.sflag [#allocation9], %s334
        %s336 = sand.u32 %s129, 1
        %s337 = smul.addr %s336, 8
        %s338 = scalar_lea.vmem [#allocation8], %s337
        // Predicated region
        $region41: #{tpu_custom_call.1} parent=27 // pred_check
          %p339 = pneg %p113
        $region42: #{tpu_custom_call.1} parent=27 // pred_check_branch
          %341 = sbr.rel (%p339) target = $region44
        $region43: #{tpu_custom_call.1} parent=27 // pred_region
          %343 = vsyncadd %s330, 0
          %s344 = smul.addr %s31, 8
          %s345 = scalar_lea.hbm %s2, %s344
          %s347 = sshll.u32 %s333, 4
          %s348 = int_to_ptr.vmem [resolvable:$true] %s347
          %s349 = sshll.u32 %s345, 4
          %s350 = int_to_ptr.hbm [resolvable:$true] %s349
          %352 = dma.vmem_to_hbm [thread:$0]  %s348, 128, %s350, %s330
        $region44: #{tpu_custom_call.1} parent=27 // pred_fallthru
          _
        // Predicated region
        $region45: #{tpu_custom_call.1} parent=27 // pred_check
          %p353 = pneg %p139
        $region46: #{tpu_custom_call.1} parent=27 // pred_check_branch
          %355 = sbr.rel (%p353) target = $region48
        $region47: #{tpu_custom_call.1} parent=27 // pred_region
          %357 = vsyncadd %s335, 0
          %s358 = smul.addr %s31, 8
          %s359 = scalar_lea.hbm %s3, %s358
          %s361 = sshll.u32 %s338, 4
          %s362 = int_to_ptr.vmem [resolvable:$true] %s361
          %s363 = sshll.u32 %s359, 4
          %s364 = int_to_ptr.hbm [resolvable:$true] %s363
          %366 = dma.vmem_to_hbm [thread:$0]  %s362, 128, %s364, %s335
        $region48: #{tpu_custom_call.1} parent=27 // pred_fallthru
          _
      $region28: #{tpu_custom_call.1} parent=5 // pred_fallthru
        _
      %p367 = scmp.le.s32.totalorder 2, %s22
      // Predicated region
      $region49: #{tpu_custom_call.1} parent=5 // pred_check
        %p368 = pneg %p367
      $region50: #{tpu_custom_call.1} parent=5 // pred_check_branch
        %370 = sbr.rel (%p368) target = $region52
      $region51: #{tpu_custom_call.1} parent=5 // pred_region
        %s371 = ssub.s32 %s22, 2
        // Predicated region
        $region53: #{tpu_custom_call.1} parent=51 // pred_check
          %p372 = pneg %p119
        $region54: #{tpu_custom_call.1} parent=51 // pred_check_branch
          %374 = sbr.rel (%p372) target = $region56
        $region55: #{tpu_custom_call.1} parent=51 // pred_region
          %s375 = sand.u32 %s104, 1
          %s376 = scalar_lea.sflag [#allocation4], %s375
          %s377 = sand.u32 %s104, 1
          %s378 = smul.addr %s377, 8
          %s379 = scalar_lea.vmem [#allocation7], %s378
          %381 = dma.done %s376, 128
        $region56: #{tpu_custom_call.1} parent=51 // pred_fallthru
          _
        // Predicated region
        $region57: #{tpu_custom_call.1} parent=51 // pred_check
          %p382 = pneg %p145
        $region58: #{tpu_custom_call.1} parent=51 // pred_check_branch
          %384 = sbr.rel (%p382) target = $region60
        $region59: #{tpu_custom_call.1} parent=51 // pred_region
          %s385 = sand.u32 %s130, 1
          %s386 = scalar_lea.sflag [#allocation9], %s385
          %s387 = sand.u32 %s130, 1
          %s388 = smul.addr %s387, 8
          %s389 = scalar_lea.vmem [#allocation8], %s388
          %391 = dma.done %s386, 128
        $region60: #{tpu_custom_call.1} parent=51 // pred_fallthru
          _
      $region52: #{tpu_custom_call.1} parent=5 // pred_fallthru
        _
    $region6: #{tpu_custom_call.1} parent=1 // loop_footer
      %s26 = sadd.s32 1, %s22
    $region7: #{tpu_custom_call.1} parent=1 // loop_footer_branch
      %21 = sbr.rel target = $region3
    $region8: #{tpu_custom_call.1} parent=1 // loop_exit
      _
    %392 = vsyncpa [#allocation3], 1
    %s393 = scalar_lea.sflag [#allocation3], 1
    %394 = vsyncpa %s393, 1
    %395 = vsyncpa [#allocation6], 1
    %s396 = scalar_lea.sflag [#allocation6], 1
    %397 = vsyncpa %s396, 1
    %398 = vsyncpa [#allocation4], 1
    %s399 = scalar_lea.sflag [#allocation4], 1
    %400 = vsyncpa %s399, 1
    %401 = vsyncpa [#allocation9], 1
    %s402 = scalar_lea.sflag [#allocation9], 1
    %403 = vsyncpa %s402, 1

</llo_original>
